<compile_context>
chip_gen: v7x
topology: tpu7x:2x2x1
jax: 0.10.0
libtpu: 0.0.40
codegen_flags: <defaults>
</compile_context>

<pallas_src>
import functools

import jax
import jax.numpy as jnp
from jax.experimental import pallas as pl
from jax.experimental.pallas import tpu as pltpu


# ----------------------------- Pallas kernel ---------------------------------

def _acmodel_kernel(obs_ref, bel_ref, wsmall_ref, wbig_ref, bias_ref, out_ref,
                    *, n_actions, n_samples):
    """One batch-block of the full forward pass.

    obs_ref    : (Bt, IN)      bf16   flattened image observations
    bel_ref    : (Bt*S, F)     bf16   flattened belief samples (batch-major)
    wsmall_ref : (291, 64)     bf16   [enc_w1(16) | enc_w2(64) | agg_w1(64) | img_w1(147)]
    wbig_ref   : (4, 128, 128) bf16   [W_emb, W_head1, W_head2, W_head3] (block-diag fused)
    bias_ref   : (8, 128)      f32    packed biases (see pack_params)
    out_ref    : (Bt, 128)     f32    lanes [0:n_actions)=log_probs, lane n_actions=value
    """
    f32 = jnp.float32
    bf16 = jnp.bfloat16

    def dot(a, w):
        # bf16 MXU operands, f32 accumulation.
        return jnp.dot(a.astype(bf16), w, preferred_element_type=f32)

    def relu(v):
        return jnp.maximum(v, 0.0)

    # ---- static slices of the packed weight slab (all offsets 16-row aligned) ----
    enc_w1 = wsmall_ref[0:16, :]        # (16, 64)
    enc_w2 = wsmall_ref[16:80, :]       # (64, 64)
    agg_w1 = wsmall_ref[80:144, :]      # (64, 64)
    img_w1 = wsmall_ref[144:291, :]     # (147, 64)

    img_b1 = bias_ref[0:1, 0:64]
    enc_b1 = bias_ref[1:2, 0:64]
    enc_b2 = bias_ref[2:3, 0:64]
    agg_b1 = bias_ref[3:4, 0:64]
    b_emb = bias_ref[4:5, :]            # [img_b2 | agg_b2]
    b_h1 = bias_ref[5:6, :]             # [act_b1 | cri_b1]
    b_h2 = bias_ref[6:7, :]             # [act_b2 | cri_b2]
    b_h3 = bias_ref[7:8, :]             # [act_b3 | cri_b3 | 0...]

    bt = obs_ref.shape[0]

    # ---- image branch, layer 1 ----
    h_img = relu(dot(obs_ref[...], img_w1) + img_b1)            # (Bt, 64)

    # ---- belief encoder per sample, then mean over samples (XLU reduction) ----
    he = relu(dot(bel_ref[...], enc_w1) + enc_b1)               # (Bt*S, 64)
    he = dot(he, enc_w2) + enc_b2                               # (Bt*S, 64)
    # Rows are batch-major groups of S samples; S is a multiple of 8 so this reshape
    # is layout-preserving (no data movement).
    he = he.reshape(bt, n_samples, he.shape[-1])                # (Bt, S, 64)
    hm = jnp.sum(he, axis=1) * f32(1.0 / n_samples)             # (Bt, 64)

    # ---- belief aggregator, layer 1 ----
    h_agg = relu(dot(hm, agg_w1) + agg_b1)                      # (Bt, 64)

    # ---- fused (image layer 2 | agg layer 2): one lane-dense (128,128) matmul ----
    h_cat = jnp.concatenate([h_img, h_agg], axis=-1)            # (Bt, 128)
    emb = dot(h_cat, wbig_ref[0]) + b_emb                       # (Bt, 128) = [x_img|b_enc]

    # ---- fused actor/critic heads: 3 lane-dense (128,128) matmuls ----
    h1 = relu(dot(emb, wbig_ref[1]) + b_h1)                     # [a1 | c1]
    h2 = relu(dot(h1, wbig_ref[2]) + b_h2)                      # [a2 | c2]
    head = dot(h2, wbig_ref[3]) + b_h3                          # lanes 0..A-1 logits, A value

    # ---- masked log_softmax over the first n_actions lanes ----
    col = jax.lax.broadcasted_iota(jnp.int32, head.shape, 1)
    amask = col < n_actions
    neg = f32(-1e30)
    m = jnp.max(jnp.where(amask, head, neg), axis=-1, keepdims=True)
    s = head - m
    e = jnp.exp(jnp.where(amask, s, neg))
    lse = jnp.log(jnp.sum(e, axis=-1, keepdims=True))

    # lanes < n_actions: log-probs; lane n_actions: critic value; rest: zeros.
    out_ref[...] = jnp.where(amask, s - lse, head)


# ----------------------------- parameter init --------------------------------

def _init_linear(key, in_dim, out_dim):
    """PyTorch init_params: weight ~ N(0,1), rows L2-normalized, bias = 0.
    Weight returned in (in_dim, out_dim) layout for x @ W; bias as (1, out_dim)."""
    w = jax.random.normal(key, (out_dim, in_dim), dtype=jnp.float32)
    w = w / jnp.sqrt(jnp.sum(w * w, axis=1, keepdims=True))
    return w.T, jnp.zeros((1, out_dim), dtype=jnp.float32)


def make_params(key, input_size, latent_dim_f=16, embedding_size=128, n_actions=7):
    keys = jax.random.split(key, 12)
    p = {}
    p["img_w1"], p["img_b1"] = _init_linear(keys[0], input_size, 64)
    p["img_w2"], p["img_b2"] = _init_linear(keys[1], 64, 64)
    p["enc_w1"], p["enc_b1"] = _init_linear(keys[2], latent_dim_f, 64)
    p["enc_w2"], p["enc_b2"] = _init_linear(keys[3], 64, 64)
    p["agg_w1"], p["agg_b1"] = _init_linear(keys[4], 64, 64)
    p["agg_w2"], p["agg_b2"] = _init_linear(keys[5], 64, 64)
    p["act_w1"], p["act_b1"] = _init_linear(keys[6], embedding_size, 64)
    p["act_w2"], p["act_b2"] = _init_linear(keys[7], 64, 64)
    p["act_w3"], p["act_b3"] = _init_linear(keys[8], 64, n_actions)
    p["cri_w1"], p["cri_b1"] = _init_linear(keys[9], embedding_size, 64)
    p["cri_w2"], p["cri_b2"] = _init_linear(keys[10], 64, 64)
    p["cri_w3"], p["cri_b3"] = _init_linear(keys[11], 64, 1)
    return p


def pack_params(params, n_actions=7):
    """Pack the 26 individual tensors into 3 contiguous slabs (done once, off the hot path)."""
    f32, bf16 = jnp.float32, jnp.bfloat16

    # Guard the 64/64 embedding split this packing assumes (review correctness concern).
    assert params["img_w2"].shape == (64, 64) and params["agg_w2"].shape == (64, 64)
    assert params["act_w1"].shape[0] == 128 and params["cri_w1"].shape[0] == 128
    assert params["act_w3"].shape == (64, n_actions) and params["cri_w3"].shape == (64, 1)
    assert params["enc_w1"].shape[0] % 8 == 0          # keeps slab slices 16-row aligned
    assert n_actions + 1 <= 128

    # Slab 1: all 64-column weights, stacked along rows (offsets 0,16,80,144).
    w_small = jnp.concatenate(
        [params["enc_w1"], params["enc_w2"], params["agg_w1"], params["img_w1"]],
        axis=0).astype(bf16)                                        # (291, 64)

    # Slab 2: fused 128x128 weights.
    w_emb = jnp.zeros((128, 128), f32)
    w_emb = w_emb.at[:64, :64].set(params["img_w2"]).at[64:, 64:].set(params["agg_w2"])
    w_h1 = jnp.concatenate([params["act_w1"], params["cri_w1"]], axis=1)      # (128, 128)
    w_h2 = jnp.zeros((128, 128), f32)
    w_h2 = w_h2.at[:64, :64].set(params["act_w2"]).at[64:, 64:].set(params["cri_w2"])
    w_h3 = jnp.zeros((128, 128), f32)
    w_h3 = w_h3.at[:64, :n_actions].set(params["act_w3"])
    w_h3 = w_h3.at[64:, n_actions:n_actions + 1].set(params["cri_w3"])
    w_big = jnp.stack([w_emb, w_h1, w_h2, w_h3], axis=0).astype(bf16)         # (4, 128, 128)

    # Slab 3: biases, one (8, 128) f32 tile.
    b = jnp.zeros((8, 128), f32)
    b = b.at[0, :64].set(params["img_b1"][0])
    b = b.at[1, :64].set(params["enc_b1"][0])
    b = b.at[2, :64].set(params["enc_b2"][0])
    b = b.at[3, :64].set(params["agg_b1"][0])
    b = b.at[4, :64].set(params["img_b2"][0]).at[4, 64:].set(params["agg_b2"][0])
    b = b.at[5, :64].set(params["act_b1"][0]).at[5, 64:].set(params["cri_b1"][0])
    b = b.at[6, :64].set(params["act_b2"][0]).at[6, 64:].set(params["cri_b2"][0])
    b = b.at[7, :n_actions].set(params["act_b3"][0])
    b = b.at[7, n_actions].set(params["cri_b3"][0, 0])

    return {"w_small": w_small, "w_big": w_big, "biases": b}


# ----------------------------- wrapper ----------------------------------------

@functools.partial(jax.jit, static_argnames=("n_actions",))
def ac_forward(obs, memory, belief_samples, packed, n_actions=7):
    B = obs.shape[0]
    S = belief_samples.shape[1]
    F_lat = belief_samples.shape[2]

    obs_flat = obs.reshape(B, -1).astype(jnp.bfloat16)            # (B, N*M*K)
    bel_flat = belief_samples.reshape(B * S, F_lat).astype(jnp.bfloat16)

    # Batch grid: block of up to 256 rows; weights stay VMEM-resident across blocks.
    if B <= 256:
        bt, bp = B, B
    else:
        bt = 256
        bp = pl.cdiv(B, bt) * bt
    if bp != B:
        obs_flat = jnp.pad(obs_flat, ((0, bp - B), (0, 0)))
        bel_flat = jnp.pad(bel_flat, ((0, (bp - B) * S), (0, 0)))

    w_small, w_big, biases = packed["w_small"], packed["w_big"], packed["biases"]
    in_dim = obs_flat.shape[1]

    kernel = functools.partial(_acmodel_kernel, n_actions=n_actions, n_samples=S)

    out = pl.pallas_call(
        kernel,
        out_shape=jax.ShapeDtypeStruct((bp, 128), jnp.float32),
        grid=(bp // bt,),
        in_specs=[
            pl.BlockSpec((bt, in_dim), lambda i: (i, 0)),          # obs block
            pl.BlockSpec((bt * S, F_lat), lambda i: (i, 0)),       # belief block
            pl.BlockSpec(w_small.shape, lambda i: (0, 0)),         # resident weights
            pl.BlockSpec(w_big.shape, lambda i: (0, 0, 0)),
            pl.BlockSpec(biases.shape, lambda i: (0, 0)),
        ],
        out_specs=pl.BlockSpec((bt, 128), lambda i: (i, 0)),
        compiler_params=pltpu.CompilerParams(
            dimension_semantics=("parallel",)),
    )(obs_flat, bel_flat, w_small, w_big, biases)

    log_probs = out[:B, :n_actions]          # Categorical(logits=log_softmax(x)) params
    value = out[:B, n_actions]               # critic(emb).squeeze(1)
    # TODO(synk): torch.distributions.Categorical object itself has no Pallas/JAX
    # equivalent; we return its log-prob parameters instead.
    return log_probs, value, memory, 0


# ----------------------------- reference (plain JAX) --------------------------

def ac_forward_ref(obs, memory, belief_samples, params):
    """Reference with the same numerics as the kernel: bf16 matmul operands, f32 accumulate,
    f32 elementwise. Structure follows the PyTorch module exactly."""
    bf16 = jnp.bfloat16

    def mm(a, w):
        return jnp.dot(a.astype(bf16), w.astype(bf16), preferred_element_type=jnp.float32)

    relu = lambda v: jnp.maximum(v, 0.0)
    B = obs.shape[0]
    S, F_lat = belief_samples.shape[1], belief_samples.shape[2]

    x = obs.reshape(B, -1)
    x = relu(mm(x, params["img_w1"]) + params["img_b1"])
    x = mm(x, params["img_w2"]) + params["img_b2"]

    h = belief_samples.reshape(B * S, F_lat)
    h = relu(mm(h, params["enc_w1"]) + params["enc_b1"])
    h = mm(h, params["enc_w2"]) + params["enc_b2"]
    h = jnp.mean(h.reshape(B, S, -1), axis=1)
    h = relu(mm(h, params["agg_w1"]) + params["agg_b1"])
    b_enc = mm(h, params["agg_w2"]) + params["agg_b2"]

    emb = jnp.concatenate([x, b_enc], axis=1)

    a = relu(mm(emb, params["act_w1"]) + params["act_b1"])
    a = relu(mm(a, params["act_w2"]) + params["act_b2"])
    logits = mm(a, params["act_w3"]) + params["act_b3"]
    logp = jax.nn.log_softmax(logits, axis=1)

    c = relu(mm(emb, params["cri_w1"]) + params["cri_b1"])
    c = relu(mm(c, params["cri_w2"]) + params["cri_b2"])
    value = (mm(c, params["cri_w3"]) + params["cri_b3"])[:, 0]
    return logp, value, memory, 0


# ----------------------------- main -------------------------------------------

if __name__ == "__main__":
    key = jax.random.PRNGKey(0)
    k_obs, k_bel, k_mem, k_par, k_bias = jax.random.split(key, 5)

    B = 2
    N, M, K = 7, 7, 3          # obs_space['image']
    S = 8                      # number of belief samples
    LATENT_F = 16              # latent_dim_f
    N_ACTIONS = 7              # action_space.n
    EMB = 64 + 64              # image embedding + belief encoding

    obs = jax.random.uniform(k_obs, (B, N, M, K), dtype=jnp.float32)
    belief_samples = jax.random.normal(k_bel, (B, S, LATENT_F), dtype=jnp.float32)
    memory = jax.random.normal(k_mem, (B, 2 * EMB), dtype=jnp.float32)  # passed through

    params = make_params(k_par, input_size=N * M * K,
                         latent_dim_f=LATENT_F, embedding_size=EMB,
                         n_actions=N_ACTIONS)
    # The module initializes biases to 0; perturb them here so the test actually
    # exercises the bias-packing path (forward semantics are independent of init).
    bias_names = [k for k in params if "_b" in k]
    bkeys = jax.random.split(k_bias, len(bias_names))
    for name, bk in zip(sorted(bias_names), bkeys):
        params[name] = 0.1 * jax.random.normal(bk, params[name].shape, dtype=jnp.float32)

    packed = pack_params(params, n_actions=N_ACTIONS)

    log_probs, value, mem_out, extra = ac_forward(
        obs, memory, belief_samples, packed, n_actions=N_ACTIONS)
    jax.block_until_ready((log_probs, value, mem_out))

    ref_logp, ref_value, _, _ = ac_forward_ref(obs, memory, belief_samples, params)

    assert log_probs.shape == (B, N_ACTIONS) and value.shape == (B,)
    assert jnp.allclose(log_probs, ref_logp, atol=5e-3, rtol=5e-3)
    assert jnp.allclose(value, ref_value, atol=5e-3, rtol=5e-3)
    assert jnp.allclose(mem_out, memory)
    assert extra == 0

    print("KERNEL_OK")
</pallas_src>

<mosaic_0001>
module attributes {stable_mosaic.version = 11 : i64} {
  func.func @_acmodel_kernel(%arg0: i32, %arg1: memref<2x147xbf16, #tpu.memory_space<vmem>>, %arg2: memref<16x16xbf16, #tpu.memory_space<vmem>>, %arg3: memref<291x64xbf16, #tpu.memory_space<vmem>>, %arg4: memref<4x128x128xbf16, #tpu.memory_space<vmem>>, %arg5: memref<8x128xf32, #tpu.memory_space<vmem>>, %arg6: memref<2x128xf32, #tpu.memory_space<vmem>>) attributes {dimension_semantics = [#tpu.dimension_semantics<parallel>], iteration_bounds = array<i64: 1>, scalar_prefetch = 0 : i64, scratch_operands = 0 : i64, tpu.core_type = #tpu.core_type<tc>, window_params = [{transform_indices = @transform_0, window_bounds = array<i64: 2, 147>}, {transform_indices = @transform_1, window_bounds = array<i64: 16, 16>}, {pipeline_mode = #tpu.pipeline_mode<synchronous>, transform_indices = @transform_2, window_bounds = array<i64: 291, 64>}, {pipeline_mode = #tpu.pipeline_mode<synchronous>, transform_indices = @transform_3, window_bounds = array<i64: 4, 128, 128>}, {pipeline_mode = #tpu.pipeline_mode<synchronous>, transform_indices = @transform_4, window_bounds = array<i64: 8, 128>}, {transform_indices = @transform_5, window_bounds = array<i64: 2, 128>}]} {
    %c0 = arith.constant 0 : index
    %c0_0 = arith.constant 0 : index
    %0 = vector.load %arg3[%c0, %c0_0] : memref<291x64xbf16, #tpu.memory_space<vmem>>, vector<16x64xbf16>
    %c16 = arith.constant 16 : index
    %c0_1 = arith.constant 0 : index
    %1 = vector.load %arg3[%c16, %c0_1] : memref<291x64xbf16, #tpu.memory_space<vmem>>, vector<64x64xbf16>
    %c80 = arith.constant 80 : index
    %c0_2 = arith.constant 0 : index
    %2 = vector.load %arg3[%c80, %c0_2] : memref<291x64xbf16, #tpu.memory_space<vmem>>, vector<64x64xbf16>
    %c144 = arith.constant 144 : index
    %c0_3 = arith.constant 0 : index
    %3 = vector.load %arg3[%c144, %c0_3] : memref<291x64xbf16, #tpu.memory_space<vmem>>, vector<147x64xbf16>
    %c0_4 = arith.constant 0 : index
    %c0_5 = arith.constant 0 : index
    %4 = vector.load %arg5[%c0_4, %c0_5] : memref<8x128xf32, #tpu.memory_space<vmem>>, vector<1x64xf32>
    %c1 = arith.constant 1 : index
    %c0_6 = arith.constant 0 : index
    %5 = vector.load %arg5[%c1, %c0_6] : memref<8x128xf32, #tpu.memory_space<vmem>>, vector<1x64xf32>
    %c2 = arith.constant 2 : index
    %c0_7 = arith.constant 0 : index
    %6 = vector.load %arg5[%c2, %c0_7] : memref<8x128xf32, #tpu.memory_space<vmem>>, vector<1x64xf32>
    %c3 = arith.constant 3 : index
    %c0_8 = arith.constant 0 : index
    %7 = vector.load %arg5[%c3, %c0_8] : memref<8x128xf32, #tpu.memory_space<vmem>>, vector<1x64xf32>
    %c4 = arith.constant 4 : index
    %c0_9 = arith.constant 0 : index
    %8 = vector.load %arg5[%c4, %c0_9] : memref<8x128xf32, #tpu.memory_space<vmem>>, vector<1x128xf32>
    %c5 = arith.constant 5 : index
    %c0_10 = arith.constant 0 : index
    %9 = vector.load %arg5[%c5, %c0_10] : memref<8x128xf32, #tpu.memory_space<vmem>>, vector<1x128xf32>
    %c6 = arith.constant 6 : index
    %c0_11 = arith.constant 0 : index
    %10 = vector.load %arg5[%c6, %c0_11] : memref<8x128xf32, #tpu.memory_space<vmem>>, vector<1x128xf32>
    %c7 = arith.constant 7 : index
    %c0_12 = arith.constant 0 : index
    %11 = vector.load %arg5[%c7, %c0_12] : memref<8x128xf32, #tpu.memory_space<vmem>>, vector<1x128xf32>
    %c0_13 = arith.constant 0 : index
    %c0_14 = arith.constant 0 : index
    %12 = vector.load %arg1[%c0_13, %c0_14] : memref<2x147xbf16, #tpu.memory_space<vmem>>, vector<2x147xbf16>
    %cst = arith.constant dense<0.000000e+00> : vector<2x64xf32>
    %13 = tpu.matmul %12, %3, %cst {dimension_numbers = #tpu.dot_dimension_numbers<[1], [0], [0], [1], [0, 0, 1, 1], [], []>} : vector<2x147xbf16>, vector<147x64xbf16>, vector<2x64xf32> -> vector<2x64xf32>
    %14 = vector.broadcast %4 : vector<1x64xf32> to vector<2x64xf32>
    %15 = arith.addf %13, %14 : vector<2x64xf32>
    %cst_15 = arith.constant 0.000000e+00 : f32
    %16 = vector.broadcast %cst_15 : f32 to vector<2x64xf32>
    %17 = arith.maximumf %15, %16 : vector<2x64xf32>
    %c0_16 = arith.constant 0 : index
    %c0_17 = arith.constant 0 : index
    %18 = vector.load %arg2[%c0_16, %c0_17] : memref<16x16xbf16, #tpu.memory_space<vmem>>, vector<16x16xbf16>
    %cst_18 = arith.constant dense<0.000000e+00> : vector<16x64xf32>
    %19 = tpu.matmul %18, %0, %cst_18 {dimension_numbers = #tpu.dot_dimension_numbers<[1], [0], [0], [1], [0, 0, 1, 1], [], []>} : vector<16x16xbf16>, vector<16x64xbf16>, vector<16x64xf32> -> vector<16x64xf32>
    %20 = vector.broadcast %5 : vector<1x64xf32> to vector<16x64xf32>
    %21 = arith.addf %19, %20 : vector<16x64xf32>
    %cst_19 = arith.constant 0.000000e+00 : f32
    %22 = vector.broadcast %cst_19 : f32 to vector<16x64xf32>
    %23 = arith.maximumf %21, %22 : vector<16x64xf32>
    %24 = arith.truncf %23 : vector<16x64xf32> to vector<16x64xbf16>
    %cst_20 = arith.constant dense<0.000000e+00> : vector<16x64xf32>
    %25 = tpu.matmul %24, %1, %cst_20 {dimension_numbers = #tpu.dot_dimension_numbers<[1], [0], [0], [1], [0, 0, 1, 1], [], []>} : vector<16x64xbf16>, vector<64x64xbf16>, vector<16x64xf32> -> vector<16x64xf32>
    %26 = vector.broadcast %6 : vector<1x64xf32> to vector<16x64xf32>
    %27 = arith.addf %25, %26 : vector<16x64xf32>
    %28 = vector.shape_cast %27 : vector<16x64xf32> to vector<2x8x64xf32>
    %cst_21 = arith.constant dense<0.000000e+00> : vector<2x64xf32>
    %29 = vector.multi_reduction <add>, %28, %cst_21 [1] : vector<2x8x64xf32> to vector<2x64xf32>
    %cst_22 = arith.constant 1.250000e-01 : f32
    %30 = vector.broadcast %cst_22 : f32 to vector<2x64xf32>
    %31 = arith.mulf %29, %30 : vector<2x64xf32>
    %32 = arith.truncf %31 : vector<2x64xf32> to vector<2x64xbf16>
    %cst_23 = arith.constant dense<0.000000e+00> : vector<2x64xf32>
    %33 = tpu.matmul %32, %2, %cst_23 {dimension_numbers = #tpu.dot_dimension_numbers<[1], [0], [0], [1], [0, 0, 1, 1], [], []>} : vector<2x64xbf16>, vector<64x64xbf16>, vector<2x64xf32> -> vector<2x64xf32>
    %34 = vector.broadcast %7 : vector<1x64xf32> to vector<2x64xf32>
    %35 = arith.addf %33, %34 : vector<2x64xf32>
    %cst_24 = arith.constant 0.000000e+00 : f32
    %36 = vector.broadcast %cst_24 : f32 to vector<2x64xf32>
    %37 = arith.maximumf %35, %36 : vector<2x64xf32>
    %38 = tpu.concatenate %17, %37 in 1 : vector<2x64xf32>, vector<2x64xf32> -> vector<2x128xf32>
    %c0_25 = arith.constant 0 : index
    %c0_26 = arith.constant 0 : index
    %c0_27 = arith.constant 0 : index
    %39 = vector.load %arg4[%c0_25, %c0_26, %c0_27] : memref<4x128x128xbf16, #tpu.memory_space<vmem>>, vector<1x128x128xbf16>
    %40 = vector.shape_cast %39 : vector<1x128x128xbf16> to vector<128x128xbf16>
    %41 = arith.truncf %38 : vector<2x128xf32> to vector<2x128xbf16>
    %cst_28 = arith.constant dense<0.000000e+00> : vector<2x128xf32>
    %42 = tpu.matmul %41, %40, %cst_28 {dimension_numbers = #tpu.dot_dimension_numbers<[1], [0], [0], [1], [0, 0, 1, 1], [], []>} : vector<2x128xbf16>, vector<128x128xbf16>, vector<2x128xf32> -> vector<2x128xf32>
    %43 = vector.broadcast %8 : vector<1x128xf32> to vector<2x128xf32>
    %44 = arith.addf %42, %43 : vector<2x128xf32>
    %c1_29 = arith.constant 1 : index
    %c0_30 = arith.constant 0 : index
    %c0_31 = arith.constant 0 : index
    %45 = vector.load %arg4[%c1_29, %c0_30, %c0_31] : memref<4x128x128xbf16, #tpu.memory_space<vmem>>, vector<1x128x128xbf16>
    %46 = vector.shape_cast %45 : vector<1x128x128xbf16> to vector<128x128xbf16>
    %47 = arith.truncf %44 : vector<2x128xf32> to vector<2x128xbf16>
    %cst_32 = arith.constant dense<0.000000e+00> : vector<2x128xf32>
    %48 = tpu.matmul %47, %46, %cst_32 {dimension_numbers = #tpu.dot_dimension_numbers<[1], [0], [0], [1], [0, 0, 1, 1], [], []>} : vector<2x128xbf16>, vector<128x128xbf16>, vector<2x128xf32> -> vector<2x128xf32>
    %49 = vector.broadcast %9 : vector<1x128xf32> to vector<2x128xf32>
    %50 = arith.addf %48, %49 : vector<2x128xf32>
    %cst_33 = arith.constant 0.000000e+00 : f32
    %51 = vector.broadcast %cst_33 : f32 to vector<2x128xf32>
    %52 = arith.maximumf %50, %51 : vector<2x128xf32>
    %c2_34 = arith.constant 2 : index
    %c0_35 = arith.constant 0 : index
    %c0_36 = arith.constant 0 : index
    %53 = vector.load %arg4[%c2_34, %c0_35, %c0_36] : memref<4x128x128xbf16, #tpu.memory_space<vmem>>, vector<1x128x128xbf16>
    %54 = vector.shape_cast %53 : vector<1x128x128xbf16> to vector<128x128xbf16>
    %55 = arith.truncf %52 : vector<2x128xf32> to vector<2x128xbf16>
    %cst_37 = arith.constant dense<0.000000e+00> : vector<2x128xf32>
    %56 = tpu.matmul %55, %54, %cst_37 {dimension_numbers = #tpu.dot_dimension_numbers<[1], [0], [0], [1], [0, 0, 1, 1], [], []>} : vector<2x128xbf16>, vector<128x128xbf16>, vector<2x128xf32> -> vector<2x128xf32>
    %57 = vector.broadcast %10 : vector<1x128xf32> to vector<2x128xf32>
    %58 = arith.addf %56, %57 : vector<2x128xf32>
    %cst_38 = arith.constant 0.000000e+00 : f32
    %59 = vector.broadcast %cst_38 : f32 to vector<2x128xf32>
    %60 = arith.maximumf %58, %59 : vector<2x128xf32>
    %c3_39 = arith.constant 3 : index
    %c0_40 = arith.constant 0 : index
    %c0_41 = arith.constant 0 : index
    %61 = vector.load %arg4[%c3_39, %c0_40, %c0_41] : memref<4x128x128xbf16, #tpu.memory_space<vmem>>, vector<1x128x128xbf16>
    %62 = vector.shape_cast %61 : vector<1x128x128xbf16> to vector<128x128xbf16>
    %63 = arith.truncf %60 : vector<2x128xf32> to vector<2x128xbf16>
    %cst_42 = arith.constant dense<0.000000e+00> : vector<2x128xf32>
    %64 = tpu.matmul %63, %62, %cst_42 {dimension_numbers = #tpu.dot_dimension_numbers<[1], [0], [0], [1], [0, 0, 1, 1], [], []>} : vector<2x128xbf16>, vector<128x128xbf16>, vector<2x128xf32> -> vector<2x128xf32>
    %65 = vector.broadcast %11 : vector<1x128xf32> to vector<2x128xf32>
    %66 = arith.addf %64, %65 : vector<2x128xf32>
    %67 = tpu.iota {dimensions = array<i32: 1>} : vector<2x128xi32>
    %c7_i32 = arith.constant 7 : i32
    %68 = vector.broadcast %c7_i32 : i32 to vector<2x128xi32>
    %69 = arith.cmpi slt, %67, %68 : vector<2x128xi32>
    %cst_43 = arith.constant -1.000000e+30 : f32
    %70 = vector.broadcast %cst_43 : f32 to vector<2x128xf32>
    %71 = arith.select %69, %66, %70 : vector<2x128xi1>, vector<2x128xf32>
    %cst_44 = arith.constant dense<0xFF800000> : vector<2xf32>
    %72 = vector.multi_reduction <maximumf>, %71, %cst_44 [1] : vector<2x128xf32> to vector<2xf32>
    %73 = vector.shape_cast %72 : vector<2xf32> to vector<2x1xf32>
    %74 = vector.broadcast %73 : vector<2x1xf32> to vector<2x128xf32>
    %75 = arith.subf %66, %74 : vector<2x128xf32>
    %cst_45 = arith.constant -1.000000e+30 : f32
    %76 = vector.broadcast %cst_45 : f32 to vector<2x128xf32>
    %77 = arith.select %69, %75, %76 : vector<2x128xi1>, vector<2x128xf32>
    %78 = math.exp %77 : vector<2x128xf32>
    %cst_46 = arith.constant dense<0.000000e+00> : vector<2xf32>
    %79 = vector.multi_reduction <add>, %78, %cst_46 [1] : vector<2x128xf32> to vector<2xf32>
    %80 = vector.shape_cast %79 : vector<2xf32> to vector<2x1xf32>
    %81 = math.log %80 : vector<2x1xf32>
    %82 = vector.broadcast %81 : vector<2x1xf32> to vector<2x128xf32>
    %83 = arith.subf %75, %82 : vector<2x128xf32>
    %84 = arith.select %69, %83, %66 : vector<2x128xi1>, vector<2x128xf32>
    %c0_47 = arith.constant 0 : index
    %c0_48 = arith.constant 0 : index
    %85 = vector.load %arg6[%c0_47, %c0_48] : memref<2x128xf32, #tpu.memory_space<vmem>>, vector<2x128xf32>
    tpu.vector_store %arg6[%c0_47, %c0_48], %84 {strides = array<i32>} : memref<2x128xf32, #tpu.memory_space<vmem>>, vector<2x128xf32>,
    return
  }
  func.func @transform_0(%arg0: i32) -> (i32, i32) {
    %c0_i32 = arith.constant 0 : i32
    %c0_i32_0 = arith.constant 0 : i32
    return %arg0, %c0_i32 : i32, i32
  }
  func.func @transform_1(%arg0: i32) -> (i32, i32) {
    %c0_i32 = arith.constant 0 : i32
    %c0_i32_0 = arith.constant 0 : i32
    return %arg0, %c0_i32 : i32, i32
  }
  func.func @transform_2(%arg0: i32) -> (i32, i32) {
    %c0_i32 = arith.constant 0 : i32
    %c0_i32_0 = arith.constant 0 : i32
    %c0_i32_1 = arith.constant 0 : i32
    return %c0_i32, %c0_i32_0 : i32, i32
  }
  func.func @transform_3(%arg0: i32) -> (i32, i32, i32) {
    %c0_i32 = arith.constant 0 : i32
    %c0_i32_0 = arith.constant 0 : i32
    %c0_i32_1 = arith.constant 0 : i32
    %c0_i32_2 = arith.constant 0 : i32
    return %c0_i32, %c0_i32_0, %c0_i32_1 : i32, i32, i32
  }
  func.func @transform_4(%arg0: i32) -> (i32, i32) {
    %c0_i32 = arith.constant 0 : i32
    %c0_i32_0 = arith.constant 0 : i32
    %c0_i32_1 = arith.constant 0 : i32
    return %c0_i32, %c0_i32_0 : i32, i32
  }
  func.func @transform_5(%arg0: i32) -> (i32, i32) {
    %c0_i32 = arith.constant 0 : i32
    %c0_i32_0 = arith.constant 0 : i32
    return %arg0, %c0_i32 : i32, i32
  }
}

</mosaic_0001>

<llo_original>
// kernel: ac_forward.1
$region0: #{ac_forward.1}
  #allocation0 [shape = 'u32[]', space=smem, size = 0x4, offset = 0x4, fixed_abs, tag = 'smem constant byte address 0x4 - core index']
  #allocation1 [shape = 'u32[144,128]{1,0:T(1,128)}', space=vmem, size = 0x12000, scoped, tag = 'internal scratch']
  %s0 = inlined_call_operand.vmem [shape: bf16[2,147], index: 0, kind: input, shape index: {}]
  %s1 = inlined_call_operand.vmem [shape: bf16[16,16], index: 1, kind: input, shape index: {}]
  %s2 = inlined_call_operand.vmem [shape: bf16[291,64], index: 2, kind: input, shape index: {}]
  %s3 = inlined_call_operand.vmem [shape: bf16[4,128,128], index: 3, kind: input, shape index: {}]
  %s4 = inlined_call_operand.vmem [shape: f32[8,128], index: 4, kind: input, shape index: {}]
  %s5 = inlined_call_operand.vmem [shape: f32[2,128], index: 5, kind: output, shape index: {}]
  %s6 = sld [smem:[#allocation0]]
  $region30: #{ac_forward.1} parent=0
    _
  %s8 = ssub.s32 1, %s6
  %s9 = scalar_select 0, %s8, %s6
  // Predicated region
  $region2: #{ac_forward.1} parent=0 // pred_check
    _
  $region3: #{ac_forward.1} parent=0 // pred_check_branch
    %11 = sbr.rel (0) target = $region5
  $region4: #{ac_forward.1} parent=0 // pred_region
    _
  $region5: #{ac_forward.1} parent=0 // pred_fallthru
    _
  // Predicated region
  $region6: #{ac_forward.1} parent=0 // pred_check
    _
  $region7: #{ac_forward.1} parent=0 // pred_check_branch
    %13 = sbr.rel (0) target = $region9
  $region8: #{ac_forward.1} parent=0 // pred_region
    _
  $region9: #{ac_forward.1} parent=0 // pred_fallthru
    _
  // Predicated region
  $region10: #{ac_forward.1} parent=0 // pred_check
    _
  $region11: #{ac_forward.1} parent=0 // pred_check_branch
    %15 = sbr.rel (0) target = $region13
  $region12: #{ac_forward.1} parent=0 // pred_region
    _
  $region13: #{ac_forward.1} parent=0 // pred_fallthru
    _
  // Predicated region
  $region14: #{ac_forward.1} parent=0 // pred_check
    _
  $region15: #{ac_forward.1} parent=0 // pred_check_branch
    %17 = sbr.rel (0) target = $region17
  $region16: #{ac_forward.1} parent=0 // pred_region
    _
  $region17: #{ac_forward.1} parent=0 // pred_fallthru
    _
  // Predicated region
  $region18: #{ac_forward.1} parent=0 // pred_check
    _
  $region19: #{ac_forward.1} parent=0 // pred_check_branch
    %19 = sbr.rel (0) target = $region21
  $region20: #{ac_forward.1} parent=0 // pred_region
    _
  $region21: #{ac_forward.1} parent=0 // pred_fallthru
    _
  %v21 = vld [vmem:[%s2] sm:$0xf]
  %v22 = vld [vmem:[%s2 + $0x4] sm:$0xf]
  %v23 = vld [vmem:[%s2 + $0x8] sm:$0xf]
  %v24 = vld [vmem:[%s2 + $0xc] sm:$0xf]
  %v25 = vld [vmem:[%s2 + $0x10] sm:$0xf]
  %v26 = vld [vmem:[%s2 + $0x14] sm:$0xf]
  %v27 = vld [vmem:[%s2 + $0x18] sm:$0xf]
  %v28 = vld [vmem:[%s2 + $0x1c] sm:$0xf]
  %v29 = vld [vmem:[%s2 + $0x20] sm:$0xf]
  %v30 = vld [vmem:[%s2 + $0x24] sm:$0xf]
  %v31 = vld [vmem:[%s2 + $0x28] sm:$0xf]
  %v32 = vld [vmem:[%s2 + $0x2c] sm:$0xf]
  %v33 = vld [vmem:[%s2 + $0x30] sm:$0xf]
  %v34 = vld [vmem:[%s2 + $0x34] sm:$0xf]
  %v35 = vld [vmem:[%s2 + $0x38] sm:$0xf]
  %v36 = vld [vmem:[%s2 + $0x3c] sm:$0xf]
  %v37 = vld [vmem:[%s2 + $0x40] sm:$0xf]
  %v38 = vld [vmem:[%s2 + $0x44] sm:$0xf]
  %v39 = vld [vmem:[%s2 + $0x48] sm:$0xf]
  %v40 = vld [vmem:[%s2 + $0x4c] sm:$0xf]
  %v41 = vld [vmem:[%s2 + $0x50] sm:$0xf]
  %v42 = vld [vmem:[%s2 + $0x54] sm:$0xf]
  %v43 = vld [vmem:[%s2 + $0x58] sm:$0xf]
  %v44 = vld [vmem:[%s2 + $0x5c] sm:$0xf]
  %v45 = vld [vmem:[%s2 + $0x60] sm:$0xf]
  %v46 = vld [vmem:[%s2 + $0x64] sm:$0xf]
  %v47 = vld [vmem:[%s2 + $0x68] sm:$0xf]
  %v48 = vld [vmem:[%s2 + $0x6c] sm:$0xf]
  %v49 = vld [vmem:[%s2 + $0x70] sm:$0xf]
  %v50 = vld [vmem:[%s2 + $0x74] sm:$0xf]
  %v51 = vld [vmem:[%s2 + $0x78] sm:$0xf]
  %v52 = vld [vmem:[%s2 + $0x7c] sm:$0xf]
  %v53 = vld [vmem:[%s2 + $0x80] sm:$0xf]
  %v54 = vld [vmem:[%s2 + $0x84] sm:$0xf]
  %v55 = vld [vmem:[%s2 + $0x88] sm:$0xf]
  %v56 = vld [vmem:[%s2 + $0x8c] sm:$0xf]
  %v57 = vld [vmem:[%s2 + $0x90] sm:$0x3]
  %v58 = vld [vmem:[%s4] sm:$0x1]
  %v59 = vld [vmem:[%s4 + $0x1] sm:$0x1]
  %v60 = vld [vmem:[%s4 + $0x2] sm:$0x1]
  %v61 = vld [vmem:[%s4 + $0x3] sm:$0x1]
  %v62 = vld [vmem:[%s4 + $0x4] sm:$0x1]
  %v63 = vld [vmem:[%s4 + $0x5] sm:$0x1]
  %v64 = vld [vmem:[%s4 + $0x6] sm:$0x1]
  %v65 = vld [vmem:[%s4 + $0x7] sm:$0x1]
  %v66 = vld [vmem:[%s0] sm:$0x3]
  %v67 = vlaneseq
  %v68 = vshrl.u32 %v67, 7
  %v69 = vsub.s32 0, %v68
  %v70 = vrot.slane %v58, %v69
  %v73 = vunpack.c.l.s4 1966171168
  %v74 = vunpack.c.0.s8 %v73
  %v75 = vlaneseq
  %v76 = vshrl.u32 %v75, 7
  %v77 = vsub.s32 %v74, %v76
  %v78 = vrot.slane %v66, %v77
  %v79 = vcombine.high %v78, %v78
  %v81 = vunpack.c.l.s4 1966171168
  %v82 = vunpack.c.0.s8 %v81
  %v83 = vlaneseq
  %v84 = vshrl.u32 %v83, 7
  %v85 = vsub.s32 %v82, %v84
  %v86 = vrot.slane %v78, %v85
  %v88 = vunpack.c.l.s4 1966171168
  %v89 = vunpack.c.0.s8 %v88
  %v90 = vlaneseq
  %v91 = vshrl.u32 %v90, 7
  %v92 = vsub.s32 %v89, %v91
  %v93 = vrot.slane %v79, %v92
  %v114 = vunpack.c.l.b16 %v39
  %v115 = vunpack.c.l.b16 %v40
  %v116 = vunpack.c.l.b16 %v41
  %v117 = vunpack.c.l.b16 %v42
  %v118 = vunpack.c.l.b16 %v43
  %v119 = vunpack.c.l.b16 %v44
  %v120 = vunpack.c.l.b16 %v45
  %v121 = vunpack.c.l.b16 %v46
  %v122 = vunpack.c.l.b16 %v47
  %v123 = vunpack.c.l.b16 %v48
  %v124 = vunpack.c.l.b16 %v49
  %v125 = vunpack.c.l.b16 %v50
  %v126 = vunpack.c.l.b16 %v51
  %v127 = vunpack.c.l.b16 %v52
  %v128 = vunpack.c.l.b16 %v53
  %v129 = vunpack.c.l.b16 %v54
  %v130 = vunpack.c.l.b16 %v55
  %v131 = vunpack.c.l.b16 %v56
  %v132 = vunpack.c.l.b16 %v57
  %v133 = vpack.c.b16 %v115, %v114
  %v134 = vpack.c.b16 %v117, %v116
  %v135 = vpack.c.b16 %v119, %v118
  %v136 = vpack.c.b16 %v121, %v120
  %v137 = vpack.c.b16 %v123, %v122
  %v138 = vpack.c.b16 %v125, %v124
  %v139 = vpack.c.b16 %v127, %v126
  %v140 = vpack.c.b16 %v129, %v128
  %v141 = vpack.c.b16 %v131, %v130
  %v142 = vpack.c.b16 %v132, %v132
  %vm152 = vcmask 154624
  %v154 = vsel %vm152, %v93, 0
  %vm156 = vcmask 1040384
  %vm157 = vcmask 1041408
  %v158 = vsel %vm156, 4294967295, 65535
  %v159 = vsel %vm157, %v158, 0
  %v161 = vand.u32 %v142, %v159
  %163 = vmatprep.subr.bf16.mxu0 0
  %164 = vmatpush1.bf16.msra.mxu0 %v133
  %165 = vmatprep.subr.bf16.mxu0 0
  %166 = vmatpush1.bf16.msra.mxu0 %v134
  %167 = vmatprep.subr.bf16.mxu0 0
  %168 = vmatpush1.bf16.msra.mxu0 %v135
  %169 = vmatprep.subr.bf16.mxu0 0
  %170 = vmatpush1.bf16.msra.mxu0 %v136
  %171 = vmatprep.subr.bf16.mxu0 0
  %172 = vmatpush1.bf16.msra.mxu0 %v137
  %173 = vmatprep.subr.bf16.mxu0 0
  %174 = vmatpush1.bf16.msra.mxu0 %v138
  %175 = vmatprep.subr.bf16.mxu0 0
  %176 = vmatpush1.bf16.msra.mxu0 %v139
  %177 = vmatprep.subr.bf16.mxu0 0
  %178 = vmatpush1.bf16.msra.mxu0 %v140
  %179 = vmatprep.subr.bf16.mxu0 0
  %180 = vmatpush1.bf16.msra.mxu0 %v141
  %181 = vmatprep.subr.bf16.mxu0 0
  %182 = vmatpush1.bf16.msra.mxu0 %v161
  %183 = vmatprep.subr.bf16.mxu0 0
  %184 = vmatpush1.bf16.msra.mxu0 0
  %185 = vmatprep.subr.bf16.mxu0 0
  %186 = vmatpush1.bf16.msra.mxu0 0
  %187 = vmatprep.subr.bf16.mxu0 0
  %188 = vmatpush1.bf16.msra.mxu0 0
  %189 = vmatprep.subr.bf16.mxu0 0
  %190 = vmatpush1.bf16.msra.mxu0 0
  %191 = vmatprep.subr.bf16.mxu0 0
  %192 = vmatpush1.bf16.msra.mxu0 0
  %193 = vmatprep.subr.bf16.mxu0 0
  %194 = vmatpush1.bf16.msra.mxu0 0
  %195 = vmatprep.mubr.bf16.mxu0 %v154
  %196 = vmatmul.mubr.bf16.gmra.mrb[0].mxu0 %v86
  %v197 = vpop.f32.mrb[0].mxu0
  %v198 = vadd.f32 %v70, %v197
  %v199 = vpop.f32.mrb[0].mxu0
  %v200 = vpop.f32.mrb[0].mxu0
  %v201 = vpop.f32.mrb[0].mxu0
  %202 = vdwg.mxu0
  %v203 = vmax.f32 %v198, 0.0
  %v204 = vld [vmem:[%s1] sm:$0xf]
  %v205 = vld [vmem:[%s1 + $0x4] sm:$0xf]
  %v206 = vlaneseq
  %v207 = vshrl.u32 %v206, 7
  %v208 = vsub.s32 0, %v207
  %v209 = vrot.slane %v59, %v208
  %v212 = vunpack.c.l.b16 %v204
  %v213 = vunpack.c.l.b16 %v205
  %v214 = vpack.c.b16 %v213, %v212
  %v217 = vunpack.c.l.b16 %v21
  %v218 = vunpack.c.l.b16 %v22
  %v219 = vpack.c.b16 %v218, %v217
  %vm221 = vcmask 130048
  %v223 = vsel %vm221, %v214, 0
  %225 = vmatprep.subr.bf16.mxu0 0
  %226 = vmatpush1.bf16.msra.mxu0 %v219
  %227 = vmatprep.subr.bf16.mxu0 0
  %228 = vmatpush1.bf16.msra.mxu0 0
  %229 = vmatprep.subr.bf16.mxu0 0
  %230 = vmatpush1.bf16.msra.mxu0 0
  %231 = vmatprep.subr.bf16.mxu0 0
  %232 = vmatpush1.bf16.msra.mxu0 0
  %233 = vmatprep.subr.bf16.mxu0 0
  %234 = vmatpush1.bf16.msra.mxu0 0
  %235 = vmatprep.subr.bf16.mxu0 0
  %236 = vmatpush1.bf16.msra.mxu0 0
  %237 = vmatprep.subr.bf16.mxu0 0
  %238 = vmatpush1.bf16.msra.mxu0 0
  %239 = vmatprep.subr.bf16.mxu0 0
  %240 = vmatpush1.bf16.msra.mxu0 0
  %241 = vmatprep.subr.bf16.mxu0 0
  %242 = vmatpush1.bf16.msra.mxu0 0
  %243 = vmatprep.subr.bf16.mxu0 0
  %244 = vmatpush1.bf16.msra.mxu0 0
  %245 = vmatprep.subr.bf16.mxu0 0
  %246 = vmatpush1.bf16.msra.mxu0 0
  %247 = vmatprep.subr.bf16.mxu0 0
  %248 = vmatpush1.bf16.msra.mxu0 0
  %249 = vmatprep.subr.bf16.mxu0 0
  %250 = vmatpush1.bf16.msra.mxu0 0
  %251 = vmatprep.subr.bf16.mxu0 0
  %252 = vmatpush1.bf16.msra.mxu0 0
  %253 = vmatprep.subr.bf16.mxu0 0
  %254 = vmatpush1.bf16.msra.mxu0 0
  %255 = vmatprep.subr.bf16.mxu0 0
  %256 = vmatpush1.bf16.msra.mxu0 0
  %257 = vmatprep.mubr.bf16.mxu0 0
  %258 = vmatmul.mubr.bf16.gmra.mrb[0].mxu0 %v223
  %v259 = vpop.f32.mrb[0].mxu0
  %v260 = vadd.f32 %v209, %v259
  %v261 = vpop.f32.mrb[0].mxu0
  %v262 = vpop.f32.mrb[0].mxu0
  %v263 = vadd.f32 %v209, %v262
  %v264 = vpop.f32.mrb[0].mxu0
  %265 = vdwg.mxu0
  %v266 = vmax.f32 %v260, 0.0
  %v267 = vmax.f32 %v263, 0.0
  %v268 = vpack.c.bf16 %v267, %v266
  %v269 = vlaneseq
  %v270 = vshrl.u32 %v269, 7
  %v271 = vsub.s32 0, %v270
  %v272 = vrot.slane %v60, %v271
  %v281 = vunpack.c.l.b16 %v23
  %v282 = vunpack.c.l.b16 %v24
  %v283 = vunpack.c.l.b16 %v25
  %v284 = vunpack.c.l.b16 %v26
  %v285 = vunpack.c.l.b16 %v27
  %v286 = vunpack.c.l.b16 %v28
  %v287 = vunpack.c.l.b16 %v29
  %v288 = vunpack.c.l.b16 %v30
  %v289 = vpack.c.b16 %v282, %v281
  %v290 = vpack.c.b16 %v284, %v283
  %v291 = vpack.c.b16 %v286, %v285
  %v292 = vpack.c.b16 %v288, %v287
  %vm297 = vcmask 523264
  %v299 = vsel %vm297, %v268, 0
  %301 = vmatprep.subr.bf16.mxu0 0
  %302 = vmatpush1.bf16.msra.mxu0 %v289
  %303 = vmatprep.subr.bf16.mxu0 0
  %304 = vmatpush1.bf16.msra.mxu0 %v290
  %305 = vmatprep.subr.bf16.mxu0 0
  %306 = vmatpush1.bf16.msra.mxu0 %v291
  %307 = vmatprep.subr.bf16.mxu0 0
  %308 = vmatpush1.bf16.msra.mxu0 %v292
  %309 = vmatprep.subr.bf16.mxu0 0
  %310 = vmatpush1.bf16.msra.mxu0 0
  %311 = vmatprep.subr.bf16.mxu0 0
  %312 = vmatpush1.bf16.msra.mxu0 0
  %313 = vmatprep.subr.bf16.mxu0 0
  %314 = vmatpush1.bf16.msra.mxu0 0
  %315 = vmatprep.subr.bf16.mxu0 0
  %316 = vmatpush1.bf16.msra.mxu0 0
  %317 = vmatprep.subr.bf16.mxu0 0
  %318 = vmatpush1.bf16.msra.mxu0 0
  %319 = vmatprep.subr.bf16.mxu0 0
  %320 = vmatpush1.bf16.msra.mxu0 0
  %321 = vmatprep.subr.bf16.mxu0 0
  %322 = vmatpush1.bf16.msra.mxu0 0
  %323 = vmatprep.subr.bf16.mxu0 0
  %324 = vmatpush1.bf16.msra.mxu0 0
  %325 = vmatprep.subr.bf16.mxu0 0
  %326 = vmatpush1.bf16.msra.mxu0 0
  %327 = vmatprep.subr.bf16.mxu0 0
  %328 = vmatpush1.bf16.msra.mxu0 0
  %329 = vmatprep.subr.bf16.mxu0 0
  %330 = vmatpush1.bf16.msra.mxu0 0
  %331 = vmatprep.subr.bf16.mxu0 0
  %332 = vmatpush1.bf16.msra.mxu0 0
  %333 = vmatprep.mubr.bf16.mxu0 0
  %334 = vmatmul.mubr.bf16.gmra.mrb[0].mxu0 %v299
  %v335 = vpop.f32.mrb[0].mxu0
  %v336 = vadd.f32 %v272, %v335
  %v337 = vpop.f32.mrb[0].mxu0
  %v338 = vpop.f32.mrb[0].mxu0
  %v339 = vadd.f32 %v272, %v338
  %v340 = vpop.f32.mrb[0].mxu0
  %341 = vdwg.mxu0
  %v342 = vsel %vm297, %v336, 0.0
  %v343 = vrot.slane %v342, 4
  %v344 = vadd.f32 %v342, %v343
  %v345 = vrot.slane %v344, 2
  %v346 = vadd.f32 %v344, %v345
  %v347 = vrot.slane %v346, 1
  %v348 = vadd.f32 %v346, %v347
  %v349 = vsel %vm297, %v339, 0.0
  %v350 = vrot.slane %v349, 4
  %v351 = vadd.f32 %v349, %v350
  %v352 = vrot.slane %v351, 2
  %v353 = vadd.f32 %v351, %v352
  %v354 = vrot.slane %v353, 1
  %v355 = vadd.f32 %v353, %v354
  %v356 = vmul.f32 %v348, 0.125
  %v357 = vmul.f32 %v355, 0.125
  %v358 = vpack.c.bf16 %v356, %v356
  %v359 = vpack.c.bf16 %v357, %v357
  %v360 = vlaneseq
  %v361 = vshrl.u32 %v360, 7
  %v362 = vsub.s32 0, %v361
  %v363 = vrot.slane %v61, %v362
  %v366 = vunpack.c.l.b16 %v358
  %v367 = vunpack.c.l.b16 %v359
  %vm368 = vcmask 1041409
  %v369 = vsel %vm368, %v367, %v366
  %v370 = vpack.c.b16 %v369, %v369
  %v379 = vunpack.c.l.b16 %v31
  %v380 = vunpack.c.l.b16 %v32
  %v381 = vunpack.c.l.b16 %v33
  %v382 = vunpack.c.l.b16 %v34
  %v383 = vunpack.c.l.b16 %v35
  %v384 = vunpack.c.l.b16 %v36
  %v385 = vunpack.c.l.b16 %v37
  %v386 = vunpack.c.l.b16 %v38
  %v387 = vpack.c.b16 %v380, %v379
  %v388 = vpack.c.b16 %v382, %v381
  %v389 = vpack.c.b16 %v384, %v383
  %v390 = vpack.c.b16 %v386, %v385
  %v396 = vsel %vm297, %v370, 0
  %398 = vmatprep.subr.bf16.mxu0 0
  %399 = vmatpush1.bf16.msra.mxu0 %v387
  %400 = vmatprep.subr.bf16.mxu0 0
  %401 = vmatpush1.bf16.msra.mxu0 %v388
  %402 = vmatprep.subr.bf16.mxu0 0
  %403 = vmatpush1.bf16.msra.mxu0 %v389
  %404 = vmatprep.subr.bf16.mxu0 0
  %405 = vmatpush1.bf16.msra.mxu0 %v390
  %406 = vmatprep.subr.bf16.mxu0 0
  %407 = vmatpush1.bf16.msra.mxu0 0
  %408 = vmatprep.subr.bf16.mxu0 0
  %409 = vmatpush1.bf16.msra.mxu0 0
  %410 = vmatprep.subr.bf16.mxu0 0
  %411 = vmatpush1.bf16.msra.mxu0 0
  %412 = vmatprep.subr.bf16.mxu0 0
  %413 = vmatpush1.bf16.msra.mxu0 0
  %414 = vmatprep.subr.bf16.mxu0 0
  %415 = vmatpush1.bf16.msra.mxu0 0
  %416 = vmatprep.subr.bf16.mxu0 0
  %417 = vmatpush1.bf16.msra.mxu0 0
  %418 = vmatprep.subr.bf16.mxu0 0
  %419 = vmatpush1.bf16.msra.mxu0 0
  %420 = vmatprep.subr.bf16.mxu0 0
  %421 = vmatpush1.bf16.msra.mxu0 0
  %422 = vmatprep.subr.bf16.mxu0 0
  %423 = vmatpush1.bf16.msra.mxu0 0
  %424 = vmatprep.subr.bf16.mxu0 0
  %425 = vmatpush1.bf16.msra.mxu0 0
  %426 = vmatprep.subr.bf16.mxu0 0
  %427 = vmatpush1.bf16.msra.mxu0 0
  %428 = vmatprep.subr.bf16.mxu0 0
  %429 = vmatpush1.bf16.msra.mxu0 0
  %430 = vmatprep.mubr.bf16.mxu0 0
  %431 = vmatmul.mubr.bf16.gmra.mrb[0].mxu0 %v396
  %v432 = vpop.f32.mrb[0].mxu0
  %v433 = vadd.f32 %v363, %v432
  %v434 = vpop.f32.mrb[0].mxu0
  %v435 = vpop.f32.mrb[0].mxu0
  %v436 = vpop.f32.mrb[0].mxu0
  %437 = vdwg.mxu0
  %v438 = vmax.f32 %v433, 0.0
  %440 = vrot.lane.b32.xlu0 %v438, 64
  %v441 = vpop.permute.xlu0 %440
  %v443 = vsel %vm297, %v203, %v441
  %v444 = vld [vmem:[%s3] sm:$0xf]
  %v445 = vld [vmem:[%s3 + $0x4] sm:$0xf]
  %v446 = vld [vmem:[%s3 + $0x8] sm:$0xf]
  %v447 = vld [vmem:[%s3 + $0xc] sm:$0xf]
  %v448 = vld [vmem:[%s3 + $0x10] sm:$0xf]
  %v449 = vld [vmem:[%s3 + $0x14] sm:$0xf]
  %v450 = vld [vmem:[%s3 + $0x18] sm:$0xf]
  %v451 = vld [vmem:[%s3 + $0x1c] sm:$0xf]
  %v452 = vld [vmem:[%s3 + $0x20] sm:$0xf]
  %v453 = vld [vmem:[%s3 + $0x24] sm:$0xf]
  %v454 = vld [vmem:[%s3 + $0x28] sm:$0xf]
  %v455 = vld [vmem:[%s3 + $0x2c] sm:$0xf]
  %v456 = vld [vmem:[%s3 + $0x30] sm:$0xf]
  %v457 = vld [vmem:[%s3 + $0x34] sm:$0xf]
  %v458 = vld [vmem:[%s3 + $0x38] sm:$0xf]
  %v459 = vld [vmem:[%s3 + $0x3c] sm:$0xf]
  %v460 = vpack.c.bf16 %v443, %v443
  %v461 = vlaneseq
  %v462 = vshrl.u32 %v461, 7
  %v463 = vsub.s32 0, %v462
  %v464 = vrot.slane %v62, %v463
  %v481 = vunpack.c.l.b16 %v444
  %v482 = vunpack.c.l.b16 %v445
  %v483 = vunpack.c.l.b16 %v446
  %v484 = vunpack.c.l.b16 %v447
  %v485 = vunpack.c.l.b16 %v448
  %v486 = vunpack.c.l.b16 %v449
  %v487 = vunpack.c.l.b16 %v450
  %v488 = vunpack.c.l.b16 %v451
  %v489 = vunpack.c.l.b16 %v452
  %v490 = vunpack.c.l.b16 %v453
  %v491 = vunpack.c.l.b16 %v454
  %v492 = vunpack.c.l.b16 %v455
  %v493 = vunpack.c.l.b16 %v456
  %v494 = vunpack.c.l.b16 %v457
  %v495 = vunpack.c.l.b16 %v458
  %v496 = vunpack.c.l.b16 %v459
  %v497 = vpack.c.b16 %v482, %v481
  %v498 = vpack.c.b16 %v484, %v483
  %v499 = vpack.c.b16 %v486, %v485
  %v500 = vpack.c.b16 %v488, %v487
  %v501 = vpack.c.b16 %v490, %v489
  %v502 = vpack.c.b16 %v492, %v491
  %v503 = vpack.c.b16 %v494, %v493
  %v504 = vpack.c.b16 %v496, %v495
  %513 = vmatprep.subr.bf16.mxu0 0
  %514 = vmatpush1.bf16.msra.mxu0 %v497
  %515 = vmatprep.subr.bf16.mxu0 0
  %516 = vmatpush1.bf16.msra.mxu0 %v498
  %517 = vmatprep.subr.bf16.mxu0 0
  %518 = vmatpush1.bf16.msra.mxu0 %v499
  %519 = vmatprep.subr.bf16.mxu0 0
  %520 = vmatpush1.bf16.msra.mxu0 %v500
  %521 = vmatprep.subr.bf16.mxu0 0
  %522 = vmatpush1.bf16.msra.mxu0 %v501
  %523 = vmatprep.subr.bf16.mxu0 0
  %524 = vmatpush1.bf16.msra.mxu0 %v502
  %525 = vmatprep.subr.bf16.mxu0 0
  %526 = vmatpush1.bf16.msra.mxu0 %v503
  %527 = vmatprep.subr.bf16.mxu0 0
  %528 = vmatpush1.bf16.msra.mxu0 %v504
  %529 = vmatprep.subr.bf16.mxu0 0
  %530 = vmatpush1.bf16.msra.mxu0 0
  %531 = vmatprep.subr.bf16.mxu0 0
  %532 = vmatpush1.bf16.msra.mxu0 0
  %533 = vmatprep.subr.bf16.mxu0 0
  %534 = vmatpush1.bf16.msra.mxu0 0
  %535 = vmatprep.subr.bf16.mxu0 0
  %536 = vmatpush1.bf16.msra.mxu0 0
  %537 = vmatprep.subr.bf16.mxu0 0
  %538 = vmatpush1.bf16.msra.mxu0 0
  %539 = vmatprep.subr.bf16.mxu0 0
  %540 = vmatpush1.bf16.msra.mxu0 0
  %541 = vmatprep.subr.bf16.mxu0 0
  %542 = vmatpush1.bf16.msra.mxu0 0
  %543 = vmatprep.subr.bf16.mxu0 0
  %544 = vmatpush1.bf16.msra.mxu0 0
  %545 = vmatprep.mubr.bf16.mxu0 0
  %546 = vmatmul.mubr.bf16.gmra.mrb[0].mxu0 %v460
  %v547 = vpop.f32.mrb[0].mxu0
  %v548 = vadd.f32 %v464, %v547
  %v549 = vpop.f32.mrb[0].mxu0
  %v550 = vpop.f32.mrb[0].mxu0
  %v551 = vpop.f32.mrb[0].mxu0
  %552 = vdwg.mxu0
  %s553 = scalar_lea.vmem %s3, 64
  %v554 = vld [vmem:[%s553] sm:$0xf]
  %v555 = vld [vmem:[%s553 + $0x4] sm:$0xf]
  %v556 = vld [vmem:[%s553 + $0x8] sm:$0xf]
  %v557 = vld [vmem:[%s553 + $0xc] sm:$0xf]
  %v558 = vld [vmem:[%s553 + $0x10] sm:$0xf]
  %v559 = vld [vmem:[%s553 + $0x14] sm:$0xf]
  %v560 = vld [vmem:[%s553 + $0x18] sm:$0xf]
  %v561 = vld [vmem:[%s553 + $0x1c] sm:$0xf]
  %v562 = vld [vmem:[%s553 + $0x20] sm:$0xf]
  %v563 = vld [vmem:[%s553 + $0x24] sm:$0xf]
  %v564 = vld [vmem:[%s553 + $0x28] sm:$0xf]
  %v565 = vld [vmem:[%s553 + $0x2c] sm:$0xf]
  %v566 = vld [vmem:[%s553 + $0x30] sm:$0xf]
  %v567 = vld [vmem:[%s553 + $0x34] sm:$0xf]
  %v568 = vld [vmem:[%s553 + $0x38] sm:$0xf]
  %v569 = vld [vmem:[%s553 + $0x3c] sm:$0xf]
  %v570 = vpack.c.bf16 %v548, %v548
  %v571 = vlaneseq
  %v572 = vshrl.u32 %v571, 7
  %v573 = vsub.s32 0, %v572
  %v574 = vrot.slane %v63, %v573
  %v591 = vunpack.c.l.b16 %v554
  %v592 = vunpack.c.l.b16 %v555
  %v593 = vunpack.c.l.b16 %v556
  %v594 = vunpack.c.l.b16 %v557
  %v595 = vunpack.c.l.b16 %v558
  %v596 = vunpack.c.l.b16 %v559
  %v597 = vunpack.c.l.b16 %v560
  %v598 = vunpack.c.l.b16 %v561
  %v599 = vunpack.c.l.b16 %v562
  %v600 = vunpack.c.l.b16 %v563
  %v601 = vunpack.c.l.b16 %v564
  %v602 = vunpack.c.l.b16 %v565
  %v603 = vunpack.c.l.b16 %v566
  %v604 = vunpack.c.l.b16 %v567
  %v605 = vunpack.c.l.b16 %v568
  %v606 = vunpack.c.l.b16 %v569
  %v607 = vpack.c.b16 %v592, %v591
  %v608 = vpack.c.b16 %v594, %v593
  %v609 = vpack.c.b16 %v596, %v595
  %v610 = vpack.c.b16 %v598, %v597
  %v611 = vpack.c.b16 %v600, %v599
  %v612 = vpack.c.b16 %v602, %v601
  %v613 = vpack.c.b16 %v604, %v603
  %v614 = vpack.c.b16 %v606, %v605
  %623 = vmatprep.subr.bf16.mxu0 0
  %624 = vmatpush1.bf16.msra.mxu0 %v607
  %625 = vmatprep.subr.bf16.mxu0 0
  %626 = vmatpush1.bf16.msra.mxu0 %v608
  %627 = vmatprep.subr.bf16.mxu0 0
  %628 = vmatpush1.bf16.msra.mxu0 %v609
  %629 = vmatprep.subr.bf16.mxu0 0
  %630 = vmatpush1.bf16.msra.mxu0 %v610
  %631 = vmatprep.subr.bf16.mxu0 0
  %632 = vmatpush1.bf16.msra.mxu0 %v611
  %633 = vmatprep.subr.bf16.mxu0 0
  %634 = vmatpush1.bf16.msra.mxu0 %v612
  %635 = vmatprep.subr.bf16.mxu0 0
  %636 = vmatpush1.bf16.msra.mxu0 %v613
  %637 = vmatprep.subr.bf16.mxu0 0
  %638 = vmatpush1.bf16.msra.mxu0 %v614
  %639 = vmatprep.subr.bf16.mxu0 0
  %640 = vmatpush1.bf16.msra.mxu0 0
  %641 = vmatprep.subr.bf16.mxu0 0
  %642 = vmatpush1.bf16.msra.mxu0 0
  %643 = vmatprep.subr.bf16.mxu0 0
  %644 = vmatpush1.bf16.msra.mxu0 0
  %645 = vmatprep.subr.bf16.mxu0 0
  %646 = vmatpush1.bf16.msra.mxu0 0
  %647 = vmatprep.subr.bf16.mxu0 0
  %648 = vmatpush1.bf16.msra.mxu0 0
  %649 = vmatprep.subr.bf16.mxu0 0
  %650 = vmatpush1.bf16.msra.mxu0 0
  %651 = vmatprep.subr.bf16.mxu0 0
  %652 = vmatpush1.bf16.msra.mxu0 0
  %653 = vmatprep.subr.bf16.mxu0 0
  %654 = vmatpush1.bf16.msra.mxu0 0
  %655 = vmatprep.mubr.bf16.mxu0 0
  %656 = vmatmul.mubr.bf16.gmra.mrb[0].mxu0 %v570
  %v657 = vpop.f32.mrb[0].mxu0
  %v658 = vadd.f32 %v574, %v657
  %v659 = vpop.f32.mrb[0].mxu0
  %v660 = vpop.f32.mrb[0].mxu0
  %v661 = vpop.f32.mrb[0].mxu0
  %662 = vdwg.mxu0
  %v663 = vmax.f32 %v658, 0.0
  %s664 = scalar_lea.vmem %s3, 128
  %v665 = vld [vmem:[%s664] sm:$0xf]
  %v666 = vld [vmem:[%s664 + $0x4] sm:$0xf]
  %v667 = vld [vmem:[%s664 + $0x8] sm:$0xf]
  %v668 = vld [vmem:[%s664 + $0xc] sm:$0xf]
  %v669 = vld [vmem:[%s664 + $0x10] sm:$0xf]
  %v670 = vld [vmem:[%s664 + $0x14] sm:$0xf]
  %v671 = vld [vmem:[%s664 + $0x18] sm:$0xf]
  %v672 = vld [vmem:[%s664 + $0x1c] sm:$0xf]
  %v673 = vld [vmem:[%s664 + $0x20] sm:$0xf]
  %v674 = vld [vmem:[%s664 + $0x24] sm:$0xf]
  %v675 = vld [vmem:[%s664 + $0x28] sm:$0xf]
  %v676 = vld [vmem:[%s664 + $0x2c] sm:$0xf]
  %v677 = vld [vmem:[%s664 + $0x30] sm:$0xf]
  %v678 = vld [vmem:[%s664 + $0x34] sm:$0xf]
  %v679 = vld [vmem:[%s664 + $0x38] sm:$0xf]
  %v680 = vld [vmem:[%s664 + $0x3c] sm:$0xf]
  %v681 = vpack.c.bf16 %v663, %v663
  %v682 = vlaneseq
  %v683 = vshrl.u32 %v682, 7
  %v684 = vsub.s32 0, %v683
  %v685 = vrot.slane %v64, %v684
  %v702 = vunpack.c.l.b16 %v665
  %v703 = vunpack.c.l.b16 %v666
  %v704 = vunpack.c.l.b16 %v667
  %v705 = vunpack.c.l.b16 %v668
  %v706 = vunpack.c.l.b16 %v669
  %v707 = vunpack.c.l.b16 %v670
  %v708 = vunpack.c.l.b16 %v671
  %v709 = vunpack.c.l.b16 %v672
  %v710 = vunpack.c.l.b16 %v673
  %v711 = vunpack.c.l.b16 %v674
  %v712 = vunpack.c.l.b16 %v675
  %v713 = vunpack.c.l.b16 %v676
  %v714 = vunpack.c.l.b16 %v677
  %v715 = vunpack.c.l.b16 %v678
  %v716 = vunpack.c.l.b16 %v679
  %v717 = vunpack.c.l.b16 %v680
  %v718 = vpack.c.b16 %v703, %v702
  %v719 = vpack.c.b16 %v705, %v704
  %v720 = vpack.c.b16 %v707, %v706
  %v721 = vpack.c.b16 %v709, %v708
  %v722 = vpack.c.b16 %v711, %v710
  %v723 = vpack.c.b16 %v713, %v712
  %v724 = vpack.c.b16 %v715, %v714
  %v725 = vpack.c.b16 %v717, %v716
  %734 = vmatprep.subr.bf16.mxu0 0
  %735 = vmatpush1.bf16.msra.mxu0 %v718
  %736 = vmatprep.subr.bf16.mxu0 0
  %737 = vmatpush1.bf16.msra.mxu0 %v719
  %738 = vmatprep.subr.bf16.mxu0 0
  %739 = vmatpush1.bf16.msra.mxu0 %v720
  %740 = vmatprep.subr.bf16.mxu0 0
  %741 = vmatpush1.bf16.msra.mxu0 %v721
  %742 = vmatprep.subr.bf16.mxu0 0
  %743 = vmatpush1.bf16.msra.mxu0 %v722
  %744 = vmatprep.subr.bf16.mxu0 0
  %745 = vmatpush1.bf16.msra.mxu0 %v723
  %746 = vmatprep.subr.bf16.mxu0 0
  %747 = vmatpush1.bf16.msra.mxu0 %v724
  %748 = vmatprep.subr.bf16.mxu0 0
  %749 = vmatpush1.bf16.msra.mxu0 %v725
  %750 = vmatprep.subr.bf16.mxu0 0
  %751 = vmatpush1.bf16.msra.mxu0 0
  %752 = vmatprep.subr.bf16.mxu0 0
  %753 = vmatpush1.bf16.msra.mxu0 0
  %754 = vmatprep.subr.bf16.mxu0 0
  %755 = vmatpush1.bf16.msra.mxu0 0
  %756 = vmatprep.subr.bf16.mxu0 0
  %757 = vmatpush1.bf16.msra.mxu0 0
  %758 = vmatprep.subr.bf16.mxu0 0
  %759 = vmatpush1.bf16.msra.mxu0 0
  %760 = vmatprep.subr.bf16.mxu0 0
  %761 = vmatpush1.bf16.msra.mxu0 0
  %762 = vmatprep.subr.bf16.mxu0 0
  %763 = vmatpush1.bf16.msra.mxu0 0
  %764 = vmatprep.subr.bf16.mxu0 0
  %765 = vmatpush1.bf16.msra.mxu0 0
  %766 = vmatprep.mubr.bf16.mxu0 0
  %767 = vmatmul.mubr.bf16.gmra.mrb[0].mxu0 %v681
  %v768 = vpop.f32.mrb[0].mxu0
  %v769 = vadd.f32 %v685, %v768
  %v770 = vpop.f32.mrb[0].mxu0
  %v771 = vpop.f32.mrb[0].mxu0
  %v772 = vpop.f32.mrb[0].mxu0
  %773 = vdwg.mxu0
  %v774 = vmax.f32 %v769, 0.0
  %s775 = scalar_lea.vmem %s3, 192
  %v776 = vld [vmem:[%s775] sm:$0xf]
  %v777 = vld [vmem:[%s775 + $0x4] sm:$0xf]
  %v778 = vld [vmem:[%s775 + $0x8] sm:$0xf]
  %v779 = vld [vmem:[%s775 + $0xc] sm:$0xf]
  %v780 = vld [vmem:[%s775 + $0x10] sm:$0xf]
  %v781 = vld [vmem:[%s775 + $0x14] sm:$0xf]
  %v782 = vld [vmem:[%s775 + $0x18] sm:$0xf]
  %v783 = vld [vmem:[%s775 + $0x1c] sm:$0xf]
  %v784 = vld [vmem:[%s775 + $0x20] sm:$0xf]
  %v785 = vld [vmem:[%s775 + $0x24] sm:$0xf]
  %v786 = vld [vmem:[%s775 + $0x28] sm:$0xf]
  %v787 = vld [vmem:[%s775 + $0x2c] sm:$0xf]
  %v788 = vld [vmem:[%s775 + $0x30] sm:$0xf]
  %v789 = vld [vmem:[%s775 + $0x34] sm:$0xf]
  %v790 = vld [vmem:[%s775 + $0x38] sm:$0xf]
  %v791 = vld [vmem:[%s775 + $0x3c] sm:$0xf]
  %v792 = vpack.c.bf16 %v774, %v774
  %v793 = vlaneseq
  %v794 = vshrl.u32 %v793, 7
  %v795 = vsub.s32 0, %v794
  %v796 = vrot.slane %v65, %v795
  %v813 = vunpack.c.l.b16 %v776
  %v814 = vunpack.c.l.b16 %v777
  %v815 = vunpack.c.l.b16 %v778
  %v816 = vunpack.c.l.b16 %v779
  %v817 = vunpack.c.l.b16 %v780
  %v818 = vunpack.c.l.b16 %v781
  %v819 = vunpack.c.l.b16 %v782
  %v820 = vunpack.c.l.b16 %v783
  %v821 = vunpack.c.l.b16 %v784
  %v822 = vunpack.c.l.b16 %v785
  %v823 = vunpack.c.l.b16 %v786
  %v824 = vunpack.c.l.b16 %v787
  %v825 = vunpack.c.l.b16 %v788
  %v826 = vunpack.c.l.b16 %v789
  %v827 = vunpack.c.l.b16 %v790
  %v828 = vunpack.c.l.b16 %v791
  %v829 = vpack.c.b16 %v814, %v813
  %v830 = vpack.c.b16 %v816, %v815
  %v831 = vpack.c.b16 %v818, %v817
  %v832 = vpack.c.b16 %v820, %v819
  %v833 = vpack.c.b16 %v822, %v821
  %v834 = vpack.c.b16 %v824, %v823
  %v835 = vpack.c.b16 %v826, %v825
  %v836 = vpack.c.b16 %v828, %v827
  %845 = vmatprep.subr.bf16.mxu0 0
  %846 = vmatpush1.bf16.msra.mxu0 %v829
  %847 = vmatprep.subr.bf16.mxu0 0
  %848 = vmatpush1.bf16.msra.mxu0 %v830
  %849 = vmatprep.subr.bf16.mxu0 0
  %850 = vmatpush1.bf16.msra.mxu0 %v831
  %851 = vmatprep.subr.bf16.mxu0 0
  %852 = vmatpush1.bf16.msra.mxu0 %v832
  %853 = vmatprep.subr.bf16.mxu0 0
  %854 = vmatpush1.bf16.msra.mxu0 %v833
  %855 = vmatprep.subr.bf16.mxu0 0
  %856 = vmatpush1.bf16.msra.mxu0 %v834
  %857 = vmatprep.subr.bf16.mxu0 0
  %858 = vmatpush1.bf16.msra.mxu0 %v835
  %859 = vmatprep.subr.bf16.mxu0 0
  %860 = vmatpush1.bf16.msra.mxu0 %v836
  %861 = vmatprep.subr.bf16.mxu0 0
  %862 = vmatpush1.bf16.msra.mxu0 0
  %863 = vmatprep.subr.bf16.mxu0 0
  %864 = vmatpush1.bf16.msra.mxu0 0
  %865 = vmatprep.subr.bf16.mxu0 0
  %866 = vmatpush1.bf16.msra.mxu0 0
  %867 = vmatprep.subr.bf16.mxu0 0
  %868 = vmatpush1.bf16.msra.mxu0 0
  %869 = vmatprep.subr.bf16.mxu0 0
  %870 = vmatpush1.bf16.msra.mxu0 0
  %871 = vmatprep.subr.bf16.mxu0 0
  %872 = vmatpush1.bf16.msra.mxu0 0
  %873 = vmatprep.subr.bf16.mxu0 0
  %874 = vmatpush1.bf16.msra.mxu0 0
  %875 = vmatprep.subr.bf16.mxu0 0
  %876 = vmatpush1.bf16.msra.mxu0 0
  %877 = vmatprep.mubr.bf16.mxu0 0
  %878 = vmatmul.mubr.bf16.gmra.mrb[0].mxu0 %v792
  %v879 = vpop.f32.mrb[0].mxu0
  %v880 = vadd.f32 %v796, %v879
  %v881 = vpop.f32.mrb[0].mxu0
  %v882 = vpop.f32.mrb[0].mxu0
  %v883 = vpop.f32.mrb[0].mxu0
  %884 = vdwg.mxu0
  %v885 = vlaneseq
  %v886 = vand.u32 %v885, 127
  %vm887 = vcmp.lt.s32.totalorder %v886, 7
  %v888 = vsel %vm887, %v880, -1e+30
  %v889 = vsel %vm157, %v888, -inf
  %890 = vmax.xlane.f32.xlu0 %v889
  %v891 = vpop.xlane.xlu0 %890
  %v892 = vsub.f32 %v880, %v891
  %v893 = vsel %vm887, %v892, -1e+30
  %v894 = vmul.f32 %v893, 1.442695
  %v895 = vpow.pop %v894
  %v896 = vsel %vm157, %v895, 0.0
  %897 = vadd.xlane.f32.xlu0 %v896
  %v898 = vpop.xlane.xlu0 %897
  %v899 = vlog2.pop %v898
  %v900 = vmul.f32 %v899, 0.6931472
  %v901 = vsub.f32 %v892, %v900
  %v902 = vsel %vm887, %v901, %v880
  %903 = vst [vmem:[%s5] sm:$0x3] %v902
  // Predicated region
  $region22: #{ac_forward.1} parent=0 // pred_check
    _
  $region23: #{ac_forward.1} parent=0 // pred_check_branch
    %905 = sbr.rel (0) target = $region25
  $region24: #{ac_forward.1} parent=0 // pred_region
    _
  $region25: #{ac_forward.1} parent=0 // pred_fallthru
    _
  // Predicated region
  $region26: #{ac_forward.1} parent=0 // pred_check
    _
  $region27: #{ac_forward.1} parent=0 // pred_check_branch
    %907 = sbr.rel (0) target = $region29
  $region28: #{ac_forward.1} parent=0 // pred_region
    _
  $region29: #{ac_forward.1} parent=0 // pred_fallthru
    _

</llo_original>
